<compile_context>
chip_gen: v7x
topology: tpu7x:2x2x1
jax: 0.10.0
libtpu: 0.0.40
codegen_flags: <defaults>
</compile_context>

<pallas_src>
import jax
import jax.numpy as jnp
from jax.experimental import pallas as pl
from jax.experimental.pallas import tpu as pltpu


def _round_up(x, m):
    return (x + m - 1) // m * m


def _choose_dk_tiles(D, K):
    """Class-dim (tn) / reduction (tk) tiles and padded extents (N-independent)."""
    if K <= 256:
        tn, Kp = K, K          # full-dim block: no K padding, masked vst is cheap
    else:
        tn = 256               # matches v6e/v7x 2x256x256 MXU
        Kp = _round_up(K, tn)
    Dp = _round_up(D, 128)     # lane alignment of the reduction dim
    if Dp <= 2048:
        tk = Dp                # single reduction step (small-problem fast path)
    else:
        tk = next(t for t in (2048, 1024, 512, 256, 128) if Dp % t == 0)
    return tn, tk, Dp, Kp


def init_lambda_wrapper_params(mean_c, std_c, w, b, spatial_size,
                               *, matmul_dtype=jnp.bfloat16):
    """One-time preparation of the constant operands (hoisted out of forward).

    mean_c, std_c: [C] per-channel stats of lbd.
    w: [D, K] with D = C * spatial_size;  b: [K].
    matmul_dtype: jnp.bfloat16 (fast MXU path) or jnp.float32 (strict parity).
    """
    D, K = w.shape
    tn, tk, Dp, Kp = _choose_dk_tiles(D, K)

    # Fused stats table: row 0 = mean, row 1 = 1/std, broadcast over spatial.
    mean_d = jnp.repeat(mean_c.astype(jnp.float32), spatial_size)
    inv_std_d = jnp.repeat(1.0 / std_c.astype(jnp.float32), spatial_size)
    stats = (jnp.zeros((2, Dp), jnp.float32)
             .at[0, :D].set(mean_d)
             .at[1, :D].set(inv_std_d))

    w_p = jnp.zeros((Dp, Kp), matmul_dtype).at[:D, :K].set(w.astype(matmul_dtype))
    b_p = jnp.zeros((1, Kp), jnp.float32).at[0, :K].set(b.astype(jnp.float32))

    return dict(stats=stats, w=w_p, b=b_p, D=D, K=K, tn=tn, tk=tk)


def _lambda_wrapper_kernel(x_ref, stats_ref, w_ref, b_ref, o_ref):
    k = pl.program_id(2)                      # reduction axis (last in grid)

    # lbd(x): per-feature normalization, f32 on the VPU.
    xn = (x_ref[...] - stats_ref[0:1, :]) * stats_ref[1:2, :]

    partial = jnp.dot(xn.astype(w_ref.dtype), w_ref[...],
                      preferred_element_type=jnp.float32)

    # Accumulate straight into the resident f32 output block; fold the bias
    # into the k == 0 initialization (no scratch accumulator / finalize pass).
    @pl.when(k == 0)
    def _():
        o_ref[...] = b_ref[...] + partial

    @pl.when(k != 0)
    def _():
        o_ref[...] = o_ref[...] + partial


def lambda_wrapper_forward(x_nchw, params):
    """module(lbd(x)) for NCHW input, using the pre-built params."""
    N, C, H, W = x_nchw.shape
    D, K = params["D"], params["K"]
    assert C * H * W == D, "weight / input feature-size mismatch"
    tn, tk = params["tn"], params["tk"]
    stats, w_p, b_p = params["stats"], params["w"], params["b"]
    Dp, Kp = w_p.shape

    tm = N if N <= 256 else 256               # full-dim batch block when small

    x_flat = x_nchw.reshape(N, D)             # contiguous reshape, no HBM copy
    if Dp != D:
        # Rare fallback (D not a multiple of 128): zero-pad x along D so the
        # ragged reduction tail never reads unspecified memory.
        x_flat = jnp.zeros((N, Dp), x_flat.dtype).at[:, :D].set(x_flat)

    grid = (pl.cdiv(N, tm), Kp // tn, Dp // tk)

    out = pl.pallas_call(
        _lambda_wrapper_kernel,
        out_shape=jax.ShapeDtypeStruct((N, Kp), jnp.float32),
        grid_spec=pltpu.PrefetchScalarGridSpec(
            num_scalar_prefetch=0,
            grid=grid,
            in_specs=[
                pl.BlockSpec((tm, tk), lambda i, j, k: (i, k)),   # x
                pl.BlockSpec((2, tk), lambda i, j, k: (0, k)),    # fused stats
                pl.BlockSpec((tk, tn), lambda i, j, k: (k, j)),   # W
                pl.BlockSpec((1, tn), lambda i, j, k: (0, j)),    # b
            ],
            out_specs=pl.BlockSpec((tm, tn), lambda i, j, k: (i, j)),
        ),
        compiler_params=pltpu.CompilerParams(
            dimension_semantics=("parallel", "parallel", "arbitrary")),
    )(x_flat, stats, w_p, b_p)

    return out if Kp == K else out[:, :K]


if __name__ == "__main__":
    key = jax.random.PRNGKey(0)
    kx, kw, kb = jax.random.split(key, 3)

    # Small shapes consistent with an image-classifier forward.
    N, C, H, W = 2, 4, 16, 16
    D = C * H * W
    K = 16  # number of classes

    x = jax.random.normal(kx, (N, C, H, W), dtype=jnp.float32)

    # Deterministic synthetic parameters (no checkpoint load).
    mean_c = jnp.array([0.485, 0.456, 0.406, 0.5], dtype=jnp.float32)
    std_c = jnp.array([0.229, 0.224, 0.225, 0.25], dtype=jnp.float32)
    w = jax.random.normal(kw, (D, K), dtype=jnp.float32) * 0.02
    b = jax.random.normal(kb, (K,), dtype=jnp.float32) * 0.1

    # One-time init (padding / bf16 cast hoisted out of the forward pass).
    params = init_lambda_wrapper_params(mean_c, std_c, w, b, H * W)
    params = jax.block_until_ready(params)

    out = lambda_wrapper_forward(x, params)
    out = jax.block_until_ready(out)

    # References.
    x_norm = (x - mean_c.reshape(1, C, 1, 1)) / std_c.reshape(1, C, 1, 1)
    xn_flat = x_norm.reshape(N, D)
    ref_bf16 = jnp.dot(xn_flat.astype(jnp.bfloat16), w.astype(jnp.bfloat16),
                       preferred_element_type=jnp.float32) + b
    ref_f32 = xn_flat @ w + b   # PyTorch-equivalent f32 semantics

    assert out.shape == (N, K)
    assert jnp.allclose(out, ref_bf16, atol=2e-3, rtol=2e-3)
    assert jnp.allclose(out, ref_f32, atol=5e-2, rtol=5e-2)

    print("KERNEL_OK")
</pallas_src>

<mosaic_0001>
module attributes {stable_mosaic.version = 11 : i64} {
  func.func @_lambda_wrapper_kernel(%arg0: i32, %arg1: i32, %arg2: i32, %arg3: memref<2x1024xf32, #tpu.memory_space<vmem>>, %arg4: memref<2x1024xf32, #tpu.memory_space<vmem>>, %arg5: memref<1024x16xbf16, #tpu.memory_space<vmem>>, %arg6: memref<1x16xf32, #tpu.memory_space<vmem>>, %arg7: memref<2x16xf32, #tpu.memory_space<vmem>>) attributes {dimension_semantics = [#tpu.dimension_semantics<parallel>, #tpu.dimension_semantics<parallel>, #tpu.dimension_semantics<arbitrary>], iteration_bounds = array<i64: 1, 1, 1>, scalar_prefetch = 0 : i64, scratch_operands = 0 : i64, tpu.core_type = #tpu.core_type<tc>, window_params = [{transform_indices = @transform_0, window_bounds = array<i64: 2, 1024>}, {transform_indices = @transform_1, window_bounds = array<i64: 2, 1024>}, {transform_indices = @transform_2, window_bounds = array<i64: 1024, 16>}, {transform_indices = @transform_3, window_bounds = array<i64: 1, 16>}, {transform_indices = @transform_4, window_bounds = array<i64: 2, 16>}]} {
    %c0 = arith.constant 0 : index
    %c0_0 = arith.constant 0 : index
    %0 = vector.load %arg3[%c0, %c0_0] : memref<2x1024xf32, #tpu.memory_space<vmem>>, vector<2x1024xf32>
    %c0_1 = arith.constant 0 : index
    %c0_2 = arith.constant 0 : index
    %1 = vector.load %arg4[%c0_1, %c0_2] : memref<2x1024xf32, #tpu.memory_space<vmem>>, vector<1x1024xf32>
    %2 = vector.broadcast %1 : vector<1x1024xf32> to vector<2x1024xf32>
    %3 = arith.subf %0, %2 : vector<2x1024xf32>
    %c1 = arith.constant 1 : index
    %c0_3 = arith.constant 0 : index
    %4 = vector.load %arg4[%c1, %c0_3] : memref<2x1024xf32, #tpu.memory_space<vmem>>, vector<1x1024xf32>
    %5 = vector.broadcast %4 : vector<1x1024xf32> to vector<2x1024xf32>
    %6 = arith.mulf %3, %5 : vector<2x1024xf32>
    %7 = arith.truncf %6 : vector<2x1024xf32> to vector<2x1024xbf16>
    %c0_4 = arith.constant 0 : index
    %c0_5 = arith.constant 0 : index
    %8 = vector.load %arg5[%c0_4, %c0_5] : memref<1024x16xbf16, #tpu.memory_space<vmem>>, vector<1024x16xbf16>
    %cst = arith.constant dense<0.000000e+00> : vector<2x16xf32>
    %9 = tpu.matmul %7, %8, %cst {dimension_numbers = #tpu.dot_dimension_numbers<[1], [0], [0], [1], [0, 0, 1, 1], [], []>} : vector<2x1024xbf16>, vector<1024x16xbf16>, vector<2x16xf32> -> vector<2x16xf32>
    %c0_i32 = arith.constant 0 : i32
    %10 = arith.cmpi eq, %arg2, %c0_i32 : i32
    %11 = arith.extui %10 : i1 to i32
    %c0_i32_6 = arith.constant 0 : i32
    %12 = arith.cmpi ne, %11, %c0_i32_6 : i32
    scf.if %12 {
      %c0_9 = arith.constant 0 : index
      %c0_10 = arith.constant 0 : index
      %16 = vector.load %arg6[%c0_9, %c0_10] : memref<1x16xf32, #tpu.memory_space<vmem>>, vector<1x16xf32>
      %17 = vector.broadcast %16 : vector<1x16xf32> to vector<2x16xf32>
      %18 = arith.addf %17, %9 : vector<2x16xf32>
      %c0_11 = arith.constant 0 : index
      %c0_12 = arith.constant 0 : index
      %19 = vector.load %arg7[%c0_11, %c0_12] : memref<2x16xf32, #tpu.memory_space<vmem>>, vector<2x16xf32>
      tpu.vector_store %arg7[%c0_11, %c0_12], %18 {strides = array<i32>} : memref<2x16xf32, #tpu.memory_space<vmem>>, vector<2x16xf32>,
    } else {
    }
    %c0_i32_7 = arith.constant 0 : i32
    %13 = arith.cmpi ne, %arg2, %c0_i32_7 : i32
    %14 = arith.extui %13 : i1 to i32
    %c0_i32_8 = arith.constant 0 : i32
    %15 = arith.cmpi ne, %14, %c0_i32_8 : i32
    scf.if %15 {
      %c0_9 = arith.constant 0 : index
      %c0_10 = arith.constant 0 : index
      %16 = vector.load %arg7[%c0_9, %c0_10] : memref<2x16xf32, #tpu.memory_space<vmem>>, vector<2x16xf32>
      %17 = arith.addf %16, %9 : vector<2x16xf32>
      %c0_11 = arith.constant 0 : index
      %c0_12 = arith.constant 0 : index
      %18 = vector.load %arg7[%c0_11, %c0_12] : memref<2x16xf32, #tpu.memory_space<vmem>>, vector<2x16xf32>
      tpu.vector_store %arg7[%c0_11, %c0_12], %17 {strides = array<i32>} : memref<2x16xf32, #tpu.memory_space<vmem>>, vector<2x16xf32>,
    } else {
    }
    return
  }
  func.func @transform_0(%arg0: i32, %arg1: i32, %arg2: i32) -> (i32, i32) {
    %c0_i32 = arith.constant 0 : i32
    return %arg0, %arg2 : i32, i32
  }
  func.func @transform_1(%arg0: i32, %arg1: i32, %arg2: i32) -> (i32, i32) {
    %c0_i32 = arith.constant 0 : i32
    %c0_i32_0 = arith.constant 0 : i32
    return %c0_i32, %arg2 : i32, i32
  }
  func.func @transform_2(%arg0: i32, %arg1: i32, %arg2: i32) -> (i32, i32) {
    %c0_i32 = arith.constant 0 : i32
    return %arg2, %arg1 : i32, i32
  }
  func.func @transform_3(%arg0: i32, %arg1: i32, %arg2: i32) -> (i32, i32) {
    %c0_i32 = arith.constant 0 : i32
    %c0_i32_0 = arith.constant 0 : i32
    return %c0_i32, %arg1 : i32, i32
  }
  func.func @transform_4(%arg0: i32, %arg1: i32, %arg2: i32) -> (i32, i32) {
    %c0_i32 = arith.constant 0 : i32
    return %arg0, %arg1 : i32, i32
  }
}

</mosaic_0001>

<llo_original>
// kernel: tpu_custom_call.1
$region0: #{tpu_custom_call.1}
  #allocation0 [shape = 'u32[]', space=smem, size = 0x4, offset = 0x4, fixed_abs, tag = 'smem constant byte address 0x4 - core index']
  #allocation1 [shape = 'u32[144,128]{1,0:T(1,128)}', space=vmem, size = 0x12000, scoped, tag = 'internal scratch']
  %s0 = inlined_call_operand.vmem [shape: f32[2,1024], index: 0, kind: input, shape index: {}]
  %s1 = inlined_call_operand.vmem [shape: f32[2,1024], index: 1, kind: input, shape index: {}]
  %s2 = inlined_call_operand.vmem [shape: bf16[1024,16], index: 2, kind: input, shape index: {}]
  %s3 = inlined_call_operand.vmem [shape: f32[1,16], index: 3, kind: input, shape index: {}]
  %s4 = inlined_call_operand.hbm [shape: f32[2,16], index: 4, kind: output, shape index: {}]
  %s5 = sld [smem:[#allocation0]]
  $region34: #{tpu_custom_call.1} parent=0
    _
  %s7 = ssub.s32 1, %s5
  %s8 = scalar_select 0, %s7, %s5
  $region1: #{tpu_custom_call.1} parent=0
    #allocation2 [shape = 'u8[1024]{0}', space=vmem, size = 0x400, scoped, tag = 'output window, operand 0, single buffered']
    #allocation3 [shape = 's32[1]{0}', space=sflag, size = 0x4, scoped, tag = 'scoped memory for tpu_custom_call.1']
    %9 = vsyncpa [#allocation3], 0
    // Predicated region
    $region2: #{tpu_custom_call.1} parent=1 // pred_check
      _
    $region3: #{tpu_custom_call.1} parent=1 // pred_check_branch
      %11 = sbr.rel (0) target = $region5
    $region4: #{tpu_custom_call.1} parent=1 // pred_region
      _
    $region5: #{tpu_custom_call.1} parent=1 // pred_fallthru
      _
    // Predicated region
    $region6: #{tpu_custom_call.1} parent=1 // pred_check
      _
    $region7: #{tpu_custom_call.1} parent=1 // pred_check_branch
      %13 = sbr.rel (0) target = $region9
    $region8: #{tpu_custom_call.1} parent=1 // pred_region
      _
    $region9: #{tpu_custom_call.1} parent=1 // pred_fallthru
      _
    // Predicated region
    $region10: #{tpu_custom_call.1} parent=1 // pred_check
      _
    $region11: #{tpu_custom_call.1} parent=1 // pred_check_branch
      %15 = sbr.rel (0) target = $region13
    $region12: #{tpu_custom_call.1} parent=1 // pred_region
      _
    $region13: #{tpu_custom_call.1} parent=1 // pred_fallthru
      _
    // Predicated region
    $region14: #{tpu_custom_call.1} parent=1 // pred_check
      _
    $region15: #{tpu_custom_call.1} parent=1 // pred_check_branch
      %17 = sbr.rel (0) target = $region17
    $region16: #{tpu_custom_call.1} parent=1 // pred_region
      _
    $region17: #{tpu_custom_call.1} parent=1 // pred_fallthru
      _
    %v19 = vld [vmem:[%s0] sm:$0xff]
    %v20 = vld [vmem:[%s0 + $0x8] sm:$0xff]
    %v21 = vld [vmem:[%s1] ss:$2 sm:$0xff]
    %v23 = vlaneseq
    %v24 = vshrl.u32 %v23, 7
    %v25 = vsub.s32 0, %v24
    %v26 = vrot.slane %v21, %v25
    %v27 = vlaneseq
    %v28 = vshrl.u32 %v27, 7
    %v29 = vsub.s32 1, %v28
    %v30 = vrot.slane %v21, %v29
    %v31 = vlaneseq
    %v32 = vshrl.u32 %v31, 7
    %v33 = vsub.s32 2, %v32
    %v34 = vrot.slane %v21, %v33
    %v35 = vlaneseq
    %v36 = vshrl.u32 %v35, 7
    %v37 = vsub.s32 3, %v36
    %v38 = vrot.slane %v21, %v37
    %v39 = vlaneseq
    %v40 = vshrl.u32 %v39, 7
    %v41 = vsub.s32 4, %v40
    %v42 = vrot.slane %v21, %v41
    %v43 = vlaneseq
    %v44 = vshrl.u32 %v43, 7
    %v45 = vsub.s32 5, %v44
    %v46 = vrot.slane %v21, %v45
    %v47 = vlaneseq
    %v48 = vshrl.u32 %v47, 7
    %v49 = vsub.s32 6, %v48
    %v50 = vrot.slane %v21, %v49
    %v51 = vlaneseq
    %v52 = vshrl.u32 %v51, 7
    %v53 = vsub.s32 7, %v52
    %v54 = vrot.slane %v21, %v53
    %v55 = vcombine.low %v26, %v30
    %v56 = vcombine.low %v34, %v38
    %v58 = vunpack.c.l.s4 1983009808
    %v59 = vunpack.c.0.s8 %v58
    %v60 = vlaneseq
    %v61 = vshrl.u32 %v60, 7
    %v62 = vsub.s32 %v59, %v61
    %v63 = vrot.slane %v55, %v62
    %v65 = vunpack.c.l.s4 1983009808
    %v66 = vunpack.c.0.s8 %v65
    %v67 = vlaneseq
    %v68 = vshrl.u32 %v67, 7
    %v69 = vsub.s32 %v66, %v68
    %v70 = vrot.slane %v56, %v69
    %v71 = vcombine.low %v63, %v70
    %v72 = vcombine.low %v42, %v46
    %v73 = vcombine.low %v50, %v54
    %v75 = vunpack.c.l.s4 1983009808
    %v76 = vunpack.c.0.s8 %v75
    %v77 = vlaneseq
    %v78 = vshrl.u32 %v77, 7
    %v79 = vsub.s32 %v76, %v78
    %v80 = vrot.slane %v72, %v79
    %v82 = vunpack.c.l.s4 1983009808
    %v83 = vunpack.c.0.s8 %v82
    %v84 = vlaneseq
    %v85 = vshrl.u32 %v84, 7
    %v86 = vsub.s32 %v83, %v85
    %v87 = vrot.slane %v73, %v86
    %v88 = vcombine.low %v80, %v87
    %v91 = vsub.f32 %v19, %v71
    %v92 = vsub.f32 %v20, %v88
    %s93 = scalar_lea.vmem %s1, 1
    %v94 = vld [vmem:[%s93] ss:$2 sm:$0xff]
    %v96 = vlaneseq
    %v97 = vshrl.u32 %v96, 7
    %v98 = vsub.s32 0, %v97
    %v99 = vrot.slane %v94, %v98
    %v100 = vlaneseq
    %v101 = vshrl.u32 %v100, 7
    %v102 = vsub.s32 1, %v101
    %v103 = vrot.slane %v94, %v102
    %v104 = vlaneseq
    %v105 = vshrl.u32 %v104, 7
    %v106 = vsub.s32 2, %v105
    %v107 = vrot.slane %v94, %v106
    %v108 = vlaneseq
    %v109 = vshrl.u32 %v108, 7
    %v110 = vsub.s32 3, %v109
    %v111 = vrot.slane %v94, %v110
    %v112 = vlaneseq
    %v113 = vshrl.u32 %v112, 7
    %v114 = vsub.s32 4, %v113
    %v115 = vrot.slane %v94, %v114
    %v116 = vlaneseq
    %v117 = vshrl.u32 %v116, 7
    %v118 = vsub.s32 5, %v117
    %v119 = vrot.slane %v94, %v118
    %v120 = vlaneseq
    %v121 = vshrl.u32 %v120, 7
    %v122 = vsub.s32 6, %v121
    %v123 = vrot.slane %v94, %v122
    %v124 = vlaneseq
    %v125 = vshrl.u32 %v124, 7
    %v126 = vsub.s32 7, %v125
    %v127 = vrot.slane %v94, %v126
    %v128 = vcombine.low %v99, %v103
    %v129 = vcombine.low %v107, %v111
    %v131 = vunpack.c.l.s4 1983009808
    %v132 = vunpack.c.0.s8 %v131
    %v133 = vlaneseq
    %v134 = vshrl.u32 %v133, 7
    %v135 = vsub.s32 %v132, %v134
    %v136 = vrot.slane %v128, %v135
    %v138 = vunpack.c.l.s4 1983009808
    %v139 = vunpack.c.0.s8 %v138
    %v140 = vlaneseq
    %v141 = vshrl.u32 %v140, 7
    %v142 = vsub.s32 %v139, %v141
    %v143 = vrot.slane %v129, %v142
    %v144 = vcombine.low %v136, %v143
    %v145 = vcombine.low %v115, %v119
    %v146 = vcombine.low %v123, %v127
    %v148 = vunpack.c.l.s4 1983009808
    %v149 = vunpack.c.0.s8 %v148
    %v150 = vlaneseq
    %v151 = vshrl.u32 %v150, 7
    %v152 = vsub.s32 %v149, %v151
    %v153 = vrot.slane %v145, %v152
    %v155 = vunpack.c.l.s4 1983009808
    %v156 = vunpack.c.0.s8 %v155
    %v157 = vlaneseq
    %v158 = vshrl.u32 %v157, 7
    %v159 = vsub.s32 %v156, %v158
    %v160 = vrot.slane %v146, %v159
    %v161 = vcombine.low %v153, %v160
    %v164 = vmul.f32 %v91, %v144
    %v165 = vmul.f32 %v92, %v161
    %v168 = vcombine.high %v164, %v164
    %v170 = vunpack.c.l.s4 1983009808
    %v171 = vunpack.c.0.s8 %v170
    %v172 = vlaneseq
    %v173 = vshrl.u32 %v172, 7
    %v174 = vsub.s32 %v171, %v173
    %v175 = vrot.slane %v164, %v174
    %v177 = vunpack.c.l.s4 1983009808
    %v178 = vunpack.c.0.s8 %v177
    %v179 = vlaneseq
    %v180 = vshrl.u32 %v179, 7
    %v181 = vsub.s32 %v178, %v180
    %v182 = vrot.slane %v168, %v181
    %v183 = vcombine.high %v175, %v175
    %v184 = vcombine.high %v182, %v182
    %v185 = vcombine.high %v165, %v165
    %v187 = vunpack.c.l.s4 1983009808
    %v188 = vunpack.c.0.s8 %v187
    %v189 = vlaneseq
    %v190 = vshrl.u32 %v189, 7
    %v191 = vsub.s32 %v188, %v190
    %v192 = vrot.slane %v165, %v191
    %v194 = vunpack.c.l.s4 1983009808
    %v195 = vunpack.c.0.s8 %v194
    %v196 = vlaneseq
    %v197 = vshrl.u32 %v196, 7
    %v198 = vsub.s32 %v195, %v197
    %v199 = vrot.slane %v185, %v198
    %v200 = vcombine.high %v192, %v192
    %v201 = vcombine.high %v199, %v199
    %v210 = vpack.c.bf16 %v175, %v175
    %v211 = vpack.c.bf16 %v183, %v183
    %v212 = vpack.c.bf16 %v182, %v182
    %v213 = vpack.c.bf16 %v184, %v184
    %v214 = vpack.c.bf16 %v192, %v192
    %v215 = vpack.c.bf16 %v200, %v200
    %v216 = vpack.c.bf16 %v199, %v199
    %v217 = vpack.c.bf16 %v201, %v201
    %v218 = vld [vmem:[%s2] sm:$0xf]
    %v219 = vld [vmem:[%s2 + $0x4] sm:$0xf]
    %v220 = vld [vmem:[%s2 + $0x8] sm:$0xf]
    %v221 = vld [vmem:[%s2 + $0xc] sm:$0xf]
    %v222 = vld [vmem:[%s2 + $0x10] sm:$0xf]
    %v223 = vld [vmem:[%s2 + $0x14] sm:$0xf]
    %v224 = vld [vmem:[%s2 + $0x18] sm:$0xf]
    %v225 = vld [vmem:[%s2 + $0x1c] sm:$0xf]
    %v226 = vld [vmem:[%s2 + $0x20] sm:$0xf]
    %v227 = vld [vmem:[%s2 + $0x24] sm:$0xf]
    %v228 = vld [vmem:[%s2 + $0x28] sm:$0xf]
    %v229 = vld [vmem:[%s2 + $0x2c] sm:$0xf]
    %v230 = vld [vmem:[%s2 + $0x30] sm:$0xf]
    %v231 = vld [vmem:[%s2 + $0x34] sm:$0xf]
    %v232 = vld [vmem:[%s2 + $0x38] sm:$0xf]
    %v233 = vld [vmem:[%s2 + $0x3c] sm:$0xf]
    %v234 = vld [vmem:[%s2 + $0x40] sm:$0xf]
    %v235 = vld [vmem:[%s2 + $0x44] sm:$0xf]
    %v236 = vld [vmem:[%s2 + $0x48] sm:$0xf]
    %v237 = vld [vmem:[%s2 + $0x4c] sm:$0xf]
    %v238 = vld [vmem:[%s2 + $0x50] sm:$0xf]
    %v239 = vld [vmem:[%s2 + $0x54] sm:$0xf]
    %v240 = vld [vmem:[%s2 + $0x58] sm:$0xf]
    %v241 = vld [vmem:[%s2 + $0x5c] sm:$0xf]
    %v242 = vld [vmem:[%s2 + $0x60] sm:$0xf]
    %v243 = vld [vmem:[%s2 + $0x64] sm:$0xf]
    %v244 = vld [vmem:[%s2 + $0x68] sm:$0xf]
    %v245 = vld [vmem:[%s2 + $0x6c] sm:$0xf]
    %v246 = vld [vmem:[%s2 + $0x70] sm:$0xf]
    %v247 = vld [vmem:[%s2 + $0x74] sm:$0xf]
    %v248 = vld [vmem:[%s2 + $0x78] sm:$0xf]
    %v249 = vld [vmem:[%s2 + $0x7c] sm:$0xf]
    %v250 = vld [vmem:[%s2 + $0x80] sm:$0xf]
    %v251 = vld [vmem:[%s2 + $0x84] sm:$0xf]
    %v252 = vld [vmem:[%s2 + $0x88] sm:$0xf]
    %v253 = vld [vmem:[%s2 + $0x8c] sm:$0xf]
    %v254 = vld [vmem:[%s2 + $0x90] sm:$0xf]
    %v255 = vld [vmem:[%s2 + $0x94] sm:$0xf]
    %v256 = vld [vmem:[%s2 + $0x98] sm:$0xf]
    %v257 = vld [vmem:[%s2 + $0x9c] sm:$0xf]
    %v258 = vld [vmem:[%s2 + $0xa0] sm:$0xf]
    %v259 = vld [vmem:[%s2 + $0xa4] sm:$0xf]
    %v260 = vld [vmem:[%s2 + $0xa8] sm:$0xf]
    %v261 = vld [vmem:[%s2 + $0xac] sm:$0xf]
    %v262 = vld [vmem:[%s2 + $0xb0] sm:$0xf]
    %v263 = vld [vmem:[%s2 + $0xb4] sm:$0xf]
    %v264 = vld [vmem:[%s2 + $0xb8] sm:$0xf]
    %v265 = vld [vmem:[%s2 + $0xbc] sm:$0xf]
    %v266 = vld [vmem:[%s2 + $0xc0] sm:$0xf]
    %v267 = vld [vmem:[%s2 + $0xc4] sm:$0xf]
    %v268 = vld [vmem:[%s2 + $0xc8] sm:$0xf]
    %v269 = vld [vmem:[%s2 + $0xcc] sm:$0xf]
    %v270 = vld [vmem:[%s2 + $0xd0] sm:$0xf]
    %v271 = vld [vmem:[%s2 + $0xd4] sm:$0xf]
    %v272 = vld [vmem:[%s2 + $0xd8] sm:$0xf]
    %v273 = vld [vmem:[%s2 + $0xdc] sm:$0xf]
    %v274 = vld [vmem:[%s2 + $0xe0] sm:$0xf]
    %v275 = vld [vmem:[%s2 + $0xe4] sm:$0xf]
    %v276 = vld [vmem:[%s2 + $0xe8] sm:$0xf]
    %v277 = vld [vmem:[%s2 + $0xec] sm:$0xf]
    %v278 = vld [vmem:[%s2 + $0xf0] sm:$0xf]
    %v279 = vld [vmem:[%s2 + $0xf4] sm:$0xf]
    %v280 = vld [vmem:[%s2 + $0xf8] sm:$0xf]
    %v281 = vld [vmem:[%s2 + $0xfc] sm:$0xf]
    %v282 = vld [vmem:[%s2 + $0x100] sm:$0xf]
    %v283 = vld [vmem:[%s2 + $0x104] sm:$0xf]
    %v284 = vld [vmem:[%s2 + $0x108] sm:$0xf]
    %v285 = vld [vmem:[%s2 + $0x10c] sm:$0xf]
    %v286 = vld [vmem:[%s2 + $0x110] sm:$0xf]
    %v287 = vld [vmem:[%s2 + $0x114] sm:$0xf]
    %v288 = vld [vmem:[%s2 + $0x118] sm:$0xf]
    %v289 = vld [vmem:[%s2 + $0x11c] sm:$0xf]
    %v290 = vld [vmem:[%s2 + $0x120] sm:$0xf]
    %v291 = vld [vmem:[%s2 + $0x124] sm:$0xf]
    %v292 = vld [vmem:[%s2 + $0x128] sm:$0xf]
    %v293 = vld [vmem:[%s2 + $0x12c] sm:$0xf]
    %v294 = vld [vmem:[%s2 + $0x130] sm:$0xf]
    %v295 = vld [vmem:[%s2 + $0x134] sm:$0xf]
    %v296 = vld [vmem:[%s2 + $0x138] sm:$0xf]
    %v297 = vld [vmem:[%s2 + $0x13c] sm:$0xf]
    %v298 = vld [vmem:[%s2 + $0x140] sm:$0xf]
    %v299 = vld [vmem:[%s2 + $0x144] sm:$0xf]
    %v300 = vld [vmem:[%s2 + $0x148] sm:$0xf]
    %v301 = vld [vmem:[%s2 + $0x14c] sm:$0xf]
    %v302 = vld [vmem:[%s2 + $0x150] sm:$0xf]
    %v303 = vld [vmem:[%s2 + $0x154] sm:$0xf]
    %v304 = vld [vmem:[%s2 + $0x158] sm:$0xf]
    %v305 = vld [vmem:[%s2 + $0x15c] sm:$0xf]
    %v306 = vld [vmem:[%s2 + $0x160] sm:$0xf]
    %v307 = vld [vmem:[%s2 + $0x164] sm:$0xf]
    %v308 = vld [vmem:[%s2 + $0x168] sm:$0xf]
    %v309 = vld [vmem:[%s2 + $0x16c] sm:$0xf]
    %v310 = vld [vmem:[%s2 + $0x170] sm:$0xf]
    %v311 = vld [vmem:[%s2 + $0x174] sm:$0xf]
    %v312 = vld [vmem:[%s2 + $0x178] sm:$0xf]
    %v313 = vld [vmem:[%s2 + $0x17c] sm:$0xf]
    %v314 = vld [vmem:[%s2 + $0x180] sm:$0xf]
    %v315 = vld [vmem:[%s2 + $0x184] sm:$0xf]
    %v316 = vld [vmem:[%s2 + $0x188] sm:$0xf]
    %v317 = vld [vmem:[%s2 + $0x18c] sm:$0xf]
    %v318 = vld [vmem:[%s2 + $0x190] sm:$0xf]
    %v319 = vld [vmem:[%s2 + $0x194] sm:$0xf]
    %v320 = vld [vmem:[%s2 + $0x198] sm:$0xf]
    %v321 = vld [vmem:[%s2 + $0x19c] sm:$0xf]
    %v322 = vld [vmem:[%s2 + $0x1a0] sm:$0xf]
    %v323 = vld [vmem:[%s2 + $0x1a4] sm:$0xf]
    %v324 = vld [vmem:[%s2 + $0x1a8] sm:$0xf]
    %v325 = vld [vmem:[%s2 + $0x1ac] sm:$0xf]
    %v326 = vld [vmem:[%s2 + $0x1b0] sm:$0xf]
    %v327 = vld [vmem:[%s2 + $0x1b4] sm:$0xf]
    %v328 = vld [vmem:[%s2 + $0x1b8] sm:$0xf]
    %v329 = vld [vmem:[%s2 + $0x1bc] sm:$0xf]
    %v330 = vld [vmem:[%s2 + $0x1c0] sm:$0xf]
    %v331 = vld [vmem:[%s2 + $0x1c4] sm:$0xf]
    %v332 = vld [vmem:[%s2 + $0x1c8] sm:$0xf]
    %v333 = vld [vmem:[%s2 + $0x1cc] sm:$0xf]
    %v334 = vld [vmem:[%s2 + $0x1d0] sm:$0xf]
    %v335 = vld [vmem:[%s2 + $0x1d4] sm:$0xf]
    %v336 = vld [vmem:[%s2 + $0x1d8] sm:$0xf]
    %v337 = vld [vmem:[%s2 + $0x1dc] sm:$0xf]
    %v338 = vld [vmem:[%s2 + $0x1e0] sm:$0xf]
    %v339 = vld [vmem:[%s2 + $0x1e4] sm:$0xf]
    %v340 = vld [vmem:[%s2 + $0x1e8] sm:$0xf]
    %v341 = vld [vmem:[%s2 + $0x1ec] sm:$0xf]
    %v342 = vld [vmem:[%s2 + $0x1f0] sm:$0xf]
    %v343 = vld [vmem:[%s2 + $0x1f4] sm:$0xf]
    %v344 = vld [vmem:[%s2 + $0x1f8] sm:$0xf]
    %v345 = vld [vmem:[%s2 + $0x1fc] sm:$0xf]
    %v474 = vunpack.c.l.b16 %v218
    %v475 = vunpack.c.l.b16 %v219
    %v476 = vunpack.c.l.b16 %v220
    %v477 = vunpack.c.l.b16 %v221
    %v478 = vunpack.c.l.b16 %v222
    %v479 = vunpack.c.l.b16 %v223
    %v480 = vunpack.c.l.b16 %v224
    %v481 = vunpack.c.l.b16 %v225
    %v482 = vunpack.c.l.b16 %v226
    %v483 = vunpack.c.l.b16 %v227
    %v484 = vunpack.c.l.b16 %v228
    %v485 = vunpack.c.l.b16 %v229
    %v486 = vunpack.c.l.b16 %v230
    %v487 = vunpack.c.l.b16 %v231
    %v488 = vunpack.c.l.b16 %v232
    %v489 = vunpack.c.l.b16 %v233
    %v490 = vunpack.c.l.b16 %v234
    %v491 = vunpack.c.l.b16 %v235
    %v492 = vunpack.c.l.b16 %v236
    %v493 = vunpack.c.l.b16 %v237
    %v494 = vunpack.c.l.b16 %v238
    %v495 = vunpack.c.l.b16 %v239
    %v496 = vunpack.c.l.b16 %v240
    %v497 = vunpack.c.l.b16 %v241
    %v498 = vunpack.c.l.b16 %v242
    %v499 = vunpack.c.l.b16 %v243
    %v500 = vunpack.c.l.b16 %v244
    %v501 = vunpack.c.l.b16 %v245
    %v502 = vunpack.c.l.b16 %v246
    %v503 = vunpack.c.l.b16 %v247
    %v504 = vunpack.c.l.b16 %v248
    %v505 = vunpack.c.l.b16 %v249
    %v506 = vunpack.c.l.b16 %v250
    %v507 = vunpack.c.l.b16 %v251
    %v508 = vunpack.c.l.b16 %v252
    %v509 = vunpack.c.l.b16 %v253
    %v510 = vunpack.c.l.b16 %v254
    %v511 = vunpack.c.l.b16 %v255
    %v512 = vunpack.c.l.b16 %v256
    %v513 = vunpack.c.l.b16 %v257
    %v514 = vunpack.c.l.b16 %v258
    %v515 = vunpack.c.l.b16 %v259
    %v516 = vunpack.c.l.b16 %v260
    %v517 = vunpack.c.l.b16 %v261
    %v518 = vunpack.c.l.b16 %v262
    %v519 = vunpack.c.l.b16 %v263
    %v520 = vunpack.c.l.b16 %v264
    %v521 = vunpack.c.l.b16 %v265
    %v522 = vunpack.c.l.b16 %v266
    %v523 = vunpack.c.l.b16 %v267
    %v524 = vunpack.c.l.b16 %v268
    %v525 = vunpack.c.l.b16 %v269
    %v526 = vunpack.c.l.b16 %v270
    %v527 = vunpack.c.l.b16 %v271
    %v528 = vunpack.c.l.b16 %v272
    %v529 = vunpack.c.l.b16 %v273
    %v530 = vunpack.c.l.b16 %v274
    %v531 = vunpack.c.l.b16 %v275
    %v532 = vunpack.c.l.b16 %v276
    %v533 = vunpack.c.l.b16 %v277
    %v534 = vunpack.c.l.b16 %v278
    %v535 = vunpack.c.l.b16 %v279
    %v536 = vunpack.c.l.b16 %v280
    %v537 = vunpack.c.l.b16 %v281
    %v538 = vunpack.c.l.b16 %v282
    %v539 = vunpack.c.l.b16 %v283
    %v540 = vunpack.c.l.b16 %v284
    %v541 = vunpack.c.l.b16 %v285
    %v542 = vunpack.c.l.b16 %v286
    %v543 = vunpack.c.l.b16 %v287
    %v544 = vunpack.c.l.b16 %v288
    %v545 = vunpack.c.l.b16 %v289
    %v546 = vunpack.c.l.b16 %v290
    %v547 = vunpack.c.l.b16 %v291
    %v548 = vunpack.c.l.b16 %v292
    %v549 = vunpack.c.l.b16 %v293
    %v550 = vunpack.c.l.b16 %v294
    %v551 = vunpack.c.l.b16 %v295
    %v552 = vunpack.c.l.b16 %v296
    %v553 = vunpack.c.l.b16 %v297
    %v554 = vunpack.c.l.b16 %v298
    %v555 = vunpack.c.l.b16 %v299
    %v556 = vunpack.c.l.b16 %v300
    %v557 = vunpack.c.l.b16 %v301
    %v558 = vunpack.c.l.b16 %v302
    %v559 = vunpack.c.l.b16 %v303
    %v560 = vunpack.c.l.b16 %v304
    %v561 = vunpack.c.l.b16 %v305
    %v562 = vunpack.c.l.b16 %v306
    %v563 = vunpack.c.l.b16 %v307
    %v564 = vunpack.c.l.b16 %v308
    %v565 = vunpack.c.l.b16 %v309
    %v566 = vunpack.c.l.b16 %v310
    %v567 = vunpack.c.l.b16 %v311
    %v568 = vunpack.c.l.b16 %v312
    %v569 = vunpack.c.l.b16 %v313
    %v570 = vunpack.c.l.b16 %v314
    %v571 = vunpack.c.l.b16 %v315
    %v572 = vunpack.c.l.b16 %v316
    %v573 = vunpack.c.l.b16 %v317
    %v574 = vunpack.c.l.b16 %v318
    %v575 = vunpack.c.l.b16 %v319
    %v576 = vunpack.c.l.b16 %v320
    %v577 = vunpack.c.l.b16 %v321
    %v578 = vunpack.c.l.b16 %v322
    %v579 = vunpack.c.l.b16 %v323
    %v580 = vunpack.c.l.b16 %v324
    %v581 = vunpack.c.l.b16 %v325
    %v582 = vunpack.c.l.b16 %v326
    %v583 = vunpack.c.l.b16 %v327
    %v584 = vunpack.c.l.b16 %v328
    %v585 = vunpack.c.l.b16 %v329
    %v586 = vunpack.c.l.b16 %v330
    %v587 = vunpack.c.l.b16 %v331
    %v588 = vunpack.c.l.b16 %v332
    %v589 = vunpack.c.l.b16 %v333
    %v590 = vunpack.c.l.b16 %v334
    %v591 = vunpack.c.l.b16 %v335
    %v592 = vunpack.c.l.b16 %v336
    %v593 = vunpack.c.l.b16 %v337
    %v594 = vunpack.c.l.b16 %v338
    %v595 = vunpack.c.l.b16 %v339
    %v596 = vunpack.c.l.b16 %v340
    %v597 = vunpack.c.l.b16 %v341
    %v598 = vunpack.c.l.b16 %v342
    %v599 = vunpack.c.l.b16 %v343
    %v600 = vunpack.c.l.b16 %v344
    %v601 = vunpack.c.l.b16 %v345
    %v602 = vpack.c.b16 %v475, %v474
    %v603 = vpack.c.b16 %v477, %v476
    %v604 = vpack.c.b16 %v479, %v478
    %v605 = vpack.c.b16 %v481, %v480
    %v606 = vpack.c.b16 %v483, %v482
    %v607 = vpack.c.b16 %v485, %v484
    %v608 = vpack.c.b16 %v487, %v486
    %v609 = vpack.c.b16 %v489, %v488
    %v610 = vpack.c.b16 %v491, %v490
    %v611 = vpack.c.b16 %v493, %v492
    %v612 = vpack.c.b16 %v495, %v494
    %v613 = vpack.c.b16 %v497, %v496
    %v614 = vpack.c.b16 %v499, %v498
    %v615 = vpack.c.b16 %v501, %v500
    %v616 = vpack.c.b16 %v503, %v502
    %v617 = vpack.c.b16 %v505, %v504
    %v618 = vpack.c.b16 %v507, %v506
    %v619 = vpack.c.b16 %v509, %v508
    %v620 = vpack.c.b16 %v511, %v510
    %v621 = vpack.c.b16 %v513, %v512
    %v622 = vpack.c.b16 %v515, %v514
    %v623 = vpack.c.b16 %v517, %v516
    %v624 = vpack.c.b16 %v519, %v518
    %v625 = vpack.c.b16 %v521, %v520
    %v626 = vpack.c.b16 %v523, %v522
    %v627 = vpack.c.b16 %v525, %v524
    %v628 = vpack.c.b16 %v527, %v526
    %v629 = vpack.c.b16 %v529, %v528
    %v630 = vpack.c.b16 %v531, %v530
    %v631 = vpack.c.b16 %v533, %v532
    %v632 = vpack.c.b16 %v535, %v534
    %v633 = vpack.c.b16 %v537, %v536
    %v634 = vpack.c.b16 %v539, %v538
    %v635 = vpack.c.b16 %v541, %v540
    %v636 = vpack.c.b16 %v543, %v542
    %v637 = vpack.c.b16 %v545, %v544
    %v638 = vpack.c.b16 %v547, %v546
    %v639 = vpack.c.b16 %v549, %v548
    %v640 = vpack.c.b16 %v551, %v550
    %v641 = vpack.c.b16 %v553, %v552
    %v642 = vpack.c.b16 %v555, %v554
    %v643 = vpack.c.b16 %v557, %v556
    %v644 = vpack.c.b16 %v559, %v558
    %v645 = vpack.c.b16 %v561, %v560
    %v646 = vpack.c.b16 %v563, %v562
    %v647 = vpack.c.b16 %v565, %v564
    %v648 = vpack.c.b16 %v567, %v566
    %v649 = vpack.c.b16 %v569, %v568
    %v650 = vpack.c.b16 %v571, %v570
    %v651 = vpack.c.b16 %v573, %v572
    %v652 = vpack.c.b16 %v575, %v574
    %v653 = vpack.c.b16 %v577, %v576
    %v654 = vpack.c.b16 %v579, %v578
    %v655 = vpack.c.b16 %v581, %v580
    %v656 = vpack.c.b16 %v583, %v582
    %v657 = vpack.c.b16 %v585, %v584
    %v658 = vpack.c.b16 %v587, %v586
    %v659 = vpack.c.b16 %v589, %v588
    %v660 = vpack.c.b16 %v591, %v590
    %v661 = vpack.c.b16 %v593, %v592
    %v662 = vpack.c.b16 %v595, %v594
    %v663 = vpack.c.b16 %v597, %v596
    %v664 = vpack.c.b16 %v599, %v598
    %v665 = vpack.c.b16 %v601, %v600
    %730 = vmatprep.subr.bf16.mxu0 0
    %731 = vmatpush1.bf16.msra.mxu0 %v602
    %732 = vmatprep.subr.bf16.mxu0 0
    %733 = vmatpush1.bf16.msra.mxu0 %v603
    %734 = vmatprep.subr.bf16.mxu0 0
    %735 = vmatpush1.bf16.msra.mxu0 %v604
    %736 = vmatprep.subr.bf16.mxu0 0
    %737 = vmatpush1.bf16.msra.mxu0 %v605
    %738 = vmatprep.subr.bf16.mxu0 0
    %739 = vmatpush1.bf16.msra.mxu0 %v606
    %740 = vmatprep.subr.bf16.mxu0 0
    %741 = vmatpush1.bf16.msra.mxu0 %v607
    %742 = vmatprep.subr.bf16.mxu0 0
    %743 = vmatpush1.bf16.msra.mxu0 %v608
    %744 = vmatprep.subr.bf16.mxu0 0
    %745 = vmatpush1.bf16.msra.mxu0 %v609
    %746 = vmatprep.subr.bf16.mxu0 0
    %747 = vmatpush1.bf16.msra.mxu0 %v610
    %748 = vmatprep.subr.bf16.mxu0 0
    %749 = vmatpush1.bf16.msra.mxu0 %v611
    %750 = vmatprep.subr.bf16.mxu0 0
    %751 = vmatpush1.bf16.msra.mxu0 %v612
    %752 = vmatprep.subr.bf16.mxu0 0
    %753 = vmatpush1.bf16.msra.mxu0 %v613
    %754 = vmatprep.subr.bf16.mxu0 0
    %755 = vmatpush1.bf16.msra.mxu0 %v614
    %756 = vmatprep.subr.bf16.mxu0 0
    %757 = vmatpush1.bf16.msra.mxu0 %v615
    %758 = vmatprep.subr.bf16.mxu0 0
    %759 = vmatpush1.bf16.msra.mxu0 %v616
    %760 = vmatprep.subr.bf16.mxu0 0
    %761 = vmatpush1.bf16.msra.mxu0 %v617
    %762 = vmatprep.mubr.bf16.mxu0 %v211
    %763 = vmatmul.mubr.bf16.gmra.mrb[0].mxu0 %v210
    %v764 = vpop.f32.mrb[0].mxu0
    %v765 = vadd.f32 0.0, %v764
    %v766 = vpop.f32.mrb[0].mxu0
    %v767 = vpop.f32.mrb[0].mxu0
    %v768 = vpop.f32.mrb[0].mxu0
    %769 = vdwg.mxu0
    %770 = vmatprep.subr.bf16.mxu0 0
    %771 = vmatpush1.bf16.msra.mxu0 %v618
    %772 = vmatprep.subr.bf16.mxu0 0
    %773 = vmatpush1.bf16.msra.mxu0 %v619
    %774 = vmatprep.subr.bf16.mxu0 0
    %775 = vmatpush1.bf16.msra.mxu0 %v620
    %776 = vmatprep.subr.bf16.mxu0 0
    %777 = vmatpush1.bf16.msra.mxu0 %v621
    %778 = vmatprep.subr.bf16.mxu0 0
    %779 = vmatpush1.bf16.msra.mxu0 %v622
    %780 = vmatprep.subr.bf16.mxu0 0
    %781 = vmatpush1.bf16.msra.mxu0 %v623
    %782 = vmatprep.subr.bf16.mxu0 0
    %783 = vmatpush1.bf16.msra.mxu0 %v624
    %784 = vmatprep.subr.bf16.mxu0 0
    %785 = vmatpush1.bf16.msra.mxu0 %v625
    %786 = vmatprep.subr.bf16.mxu0 0
    %787 = vmatpush1.bf16.msra.mxu0 %v626
    %788 = vmatprep.subr.bf16.mxu0 0
    %789 = vmatpush1.bf16.msra.mxu0 %v627
    %790 = vmatprep.subr.bf16.mxu0 0
    %791 = vmatpush1.bf16.msra.mxu0 %v628
    %792 = vmatprep.subr.bf16.mxu0 0
    %793 = vmatpush1.bf16.msra.mxu0 %v629
    %794 = vmatprep.subr.bf16.mxu0 0
    %795 = vmatpush1.bf16.msra.mxu0 %v630
    %796 = vmatprep.subr.bf16.mxu0 0
    %797 = vmatpush1.bf16.msra.mxu0 %v631
    %798 = vmatprep.subr.bf16.mxu0 0
    %799 = vmatpush1.bf16.msra.mxu0 %v632
    %800 = vmatprep.subr.bf16.mxu0 0
    %801 = vmatpush1.bf16.msra.mxu0 %v633
    %802 = vmatprep.mubr.bf16.mxu0 %v213
    %803 = vmatmul.mubr.bf16.gmra.mrb[0].mxu0 %v212
    %v804 = vpop.f32.mrb[0].mxu0
    %v805 = vadd.f32 %v765, %v804
    %v806 = vpop.f32.mrb[0].mxu0
    %v807 = vpop.f32.mrb[0].mxu0
    %v808 = vpop.f32.mrb[0].mxu0
    %809 = vdwg.mxu0
    %810 = vmatprep.subr.bf16.mxu0 0
    %811 = vmatpush1.bf16.msra.mxu0 %v634
    %812 = vmatprep.subr.bf16.mxu0 0
    %813 = vmatpush1.bf16.msra.mxu0 %v635
    %814 = vmatprep.subr.bf16.mxu0 0
    %815 = vmatpush1.bf16.msra.mxu0 %v636
    %816 = vmatprep.subr.bf16.mxu0 0
    %817 = vmatpush1.bf16.msra.mxu0 %v637
    %818 = vmatprep.subr.bf16.mxu0 0
    %819 = vmatpush1.bf16.msra.mxu0 %v638
    %820 = vmatprep.subr.bf16.mxu0 0
    %821 = vmatpush1.bf16.msra.mxu0 %v639
    %822 = vmatprep.subr.bf16.mxu0 0
    %823 = vmatpush1.bf16.msra.mxu0 %v640
    %824 = vmatprep.subr.bf16.mxu0 0
    %825 = vmatpush1.bf16.msra.mxu0 %v641
    %826 = vmatprep.subr.bf16.mxu0 0
    %827 = vmatpush1.bf16.msra.mxu0 %v642
    %828 = vmatprep.subr.bf16.mxu0 0
    %829 = vmatpush1.bf16.msra.mxu0 %v643
    %830 = vmatprep.subr.bf16.mxu0 0
    %831 = vmatpush1.bf16.msra.mxu0 %v644
    %832 = vmatprep.subr.bf16.mxu0 0
    %833 = vmatpush1.bf16.msra.mxu0 %v645
    %834 = vmatprep.subr.bf16.mxu0 0
    %835 = vmatpush1.bf16.msra.mxu0 %v646
    %836 = vmatprep.subr.bf16.mxu0 0
    %837 = vmatpush1.bf16.msra.mxu0 %v647
    %838 = vmatprep.subr.bf16.mxu0 0
    %839 = vmatpush1.bf16.msra.mxu0 %v648
    %840 = vmatprep.subr.bf16.mxu0 0
    %841 = vmatpush1.bf16.msra.mxu0 %v649
    %842 = vmatprep.mubr.bf16.mxu0 %v215
    %843 = vmatmul.mubr.bf16.gmra.mrb[0].mxu0 %v214
    %v844 = vpop.f32.mrb[0].mxu0
    %v845 = vadd.f32 %v805, %v844
    %v846 = vpop.f32.mrb[0].mxu0
    %v847 = vpop.f32.mrb[0].mxu0
    %v848 = vpop.f32.mrb[0].mxu0
    %849 = vdwg.mxu0
    %850 = vmatprep.subr.bf16.mxu0 0
    %851 = vmatpush1.bf16.msra.mxu0 %v650
    %852 = vmatprep.subr.bf16.mxu0 0
    %853 = vmatpush1.bf16.msra.mxu0 %v651
    %854 = vmatprep.subr.bf16.mxu0 0
    %855 = vmatpush1.bf16.msra.mxu0 %v652
    %856 = vmatprep.subr.bf16.mxu0 0
    %857 = vmatpush1.bf16.msra.mxu0 %v653
    %858 = vmatprep.subr.bf16.mxu0 0
    %859 = vmatpush1.bf16.msra.mxu0 %v654
    %860 = vmatprep.subr.bf16.mxu0 0
    %861 = vmatpush1.bf16.msra.mxu0 %v655
    %862 = vmatprep.subr.bf16.mxu0 0
    %863 = vmatpush1.bf16.msra.mxu0 %v656
    %864 = vmatprep.subr.bf16.mxu0 0
    %865 = vmatpush1.bf16.msra.mxu0 %v657
    %866 = vmatprep.subr.bf16.mxu0 0
    %867 = vmatpush1.bf16.msra.mxu0 %v658
    %868 = vmatprep.subr.bf16.mxu0 0
    %869 = vmatpush1.bf16.msra.mxu0 %v659
    %870 = vmatprep.subr.bf16.mxu0 0
    %871 = vmatpush1.bf16.msra.mxu0 %v660
    %872 = vmatprep.subr.bf16.mxu0 0
    %873 = vmatpush1.bf16.msra.mxu0 %v661
    %874 = vmatprep.subr.bf16.mxu0 0
    %875 = vmatpush1.bf16.msra.mxu0 %v662
    %876 = vmatprep.subr.bf16.mxu0 0
    %877 = vmatpush1.bf16.msra.mxu0 %v663
    %878 = vmatprep.subr.bf16.mxu0 0
    %879 = vmatpush1.bf16.msra.mxu0 %v664
    %880 = vmatprep.subr.bf16.mxu0 0
    %881 = vmatpush1.bf16.msra.mxu0 %v665
    %882 = vmatprep.mubr.bf16.mxu0 %v217
    %883 = vmatmul.mubr.bf16.gmra.mrb[0].mxu0 %v216
    %v884 = vpop.f32.mrb[0].mxu0
    %v885 = vadd.f32 %v845, %v884
    %v886 = vpop.f32.mrb[0].mxu0
    %v887 = vpop.f32.mrb[0].mxu0
    %v888 = vpop.f32.mrb[0].mxu0
    %889 = vdwg.mxu0
    %p890 = scmp.eq.s32.totalorder 0, 0
    // Predicated region
    $region18: #{tpu_custom_call.1} parent=1 // pred_check
      %p891 = pneg %p890
    $region19: #{tpu_custom_call.1} parent=1 // pred_check_branch
      %893 = sbr.rel (%p891) target = $region21
    $region20: #{tpu_custom_call.1} parent=1 // pred_region
      %v894 = vld [vmem:[%s3] sm:$0x1]
      %v896 = vlaneseq
      %v897 = vshrl.u32 %v896, 7
      %v898 = vsub.s32 0, %v897
      %v899 = vrot.slane %v894, %v898
      %v901 = vadd.f32 %v899, %v885
      %vm902 = vcmask 123904
      %903 = vst.msk [vmem:[#allocation2] sm:$0x3] %vm902, %v901
    $region21: #{tpu_custom_call.1} parent=1 // pred_fallthru
      _
    %p904 = scmp.ne.s32.totalorder 0, 0
    // Predicated region
    $region22: #{tpu_custom_call.1} parent=1 // pred_check
      %p905 = pneg %p904
    $region23: #{tpu_custom_call.1} parent=1 // pred_check_branch
      %907 = sbr.rel (%p905) target = $region25
    $region24: #{tpu_custom_call.1} parent=1 // pred_region
      %v908 = vld [vmem:[#allocation2] sm:$0x3]
      %v909 = vadd.f32 %v908, %v885
      %vm910 = vcmask 123904
      %911 = vst.msk [vmem:[#allocation2] sm:$0x3] %vm910, %v909
    $region25: #{tpu_custom_call.1} parent=1 // pred_fallthru
      _
    // Predicated region
    $region26: #{tpu_custom_call.1} parent=1 // pred_check
      _
    $region27: #{tpu_custom_call.1} parent=1 // pred_check_branch
      %913 = sbr.rel (0) target = $region29
    $region28: #{tpu_custom_call.1} parent=1 // pred_region
      %s915 = ssub.s32 32, 32
      %916 = vsyncadd [#allocation3], %s915
      %s918 = sshll.u32 [#allocation2], 4
      %s919 = int_to_ptr.vmem [resolvable:$true] %s918
      %921 = dma.vmem_to_hbm [thread:$0]  %s919, 32, %s4, [#allocation3]
    $region29: #{tpu_custom_call.1} parent=1 // pred_fallthru
      _
    // Predicated region
    $region30: #{tpu_custom_call.1} parent=1 // pred_check
      _
    $region31: #{tpu_custom_call.1} parent=1 // pred_check_branch
      %923 = sbr.rel (0) target = $region33
    $region32: #{tpu_custom_call.1} parent=1 // pred_region
      %924 = dma.done [#allocation3], 32
    $region33: #{tpu_custom_call.1} parent=1 // pred_fallthru
      _
    %925 = vsyncpa [#allocation3], 1

</llo_original>
